<compile_context>
chip_gen: v6e
topology: v6e:2x2x1
jax: 0.10.0
libtpu: 0.0.40
codegen_flags: <defaults>
</compile_context>

<pallas_src>
import functools

import jax
import jax.numpy as jnp
from jax.experimental import pallas as pl
from jax.experimental.pallas import tpu as pltpu

SMOOTH = 1e-05
LANES = 128
SUBLANES = 8
TARGET_TILE_ROWS = 8192   # (8192, 128) f32 = 4 MiB per input per grid step
STRIP_ROWS = 512          # inner strip size; keeps intermediates in vregs, not VMEM


def _strip_partials(yt, yp, threshold):
    """(r, 128) f32 strip -> ((8,128) inter, (8,128) union) partials. r % 8 == 0."""
    pred = yp > threshold
    inter_p = jnp.where(pred, yt, 0.0)
    union_p = jnp.where(pred, 1.0, 0.0) + yt
    sub = yt.shape[0] // SUBLANES
    inter = jnp.sum(inter_p.reshape(sub, SUBLANES, LANES), axis=0)
    union = jnp.sum(union_p.reshape(sub, SUBLANES, LANES), axis=0)
    return inter, union


def _tile_partials(yt_ref, yp_ref, nrows, threshold, strip_rows):
    """(8,128) partial sums over the first `nrows` rows of the current tile.

    `nrows` / `strip_rows` are static Python ints (multiples of 8), so every slice
    below is a zero-cost static ref view and the strip loop is fully unrolled.
    """
    inter = jnp.zeros((SUBLANES, LANES), jnp.float32)
    union = jnp.zeros((SUBLANES, LANES), jnp.float32)

    n_full = nrows // strip_rows
    rem = nrows - n_full * strip_rows

    for s in range(n_full):
        r0 = s * strip_rows
        yt = yt_ref[r0:r0 + strip_rows, :].astype(jnp.float32)
        yp = yp_ref[r0:r0 + strip_rows, :].astype(jnp.float32)
        di, du = _strip_partials(yt, yp, threshold)
        inter, union = inter + di, union + du

    if rem > 0:
        r0 = n_full * strip_rows
        yt = yt_ref[r0:r0 + rem, :].astype(jnp.float32)
        yp = yp_ref[r0:r0 + rem, :].astype(jnp.float32)
        di, du = _strip_partials(yt, yp, threshold)
        inter, union = inter + di, union + du

    return inter, union


def _dice_kernel(yt_ref, yp_ref, out_ref, inter_acc, union_acc, *,
                 threshold, tile_rows, rows_last, n_tiles, strip_rows):
    j = pl.program_id(0)

    @pl.when(j == 0)
    def _():
        inter_acc[...] = jnp.zeros_like(inter_acc)
        union_acc[...] = jnp.zeros_like(union_acc)

    if rows_last == tile_rows:
        # Every tile is full: single branch-free fast path (no iota, no masking).
        di, du = _tile_partials(yt_ref, yp_ref, tile_rows, threshold, strip_rows)
        inter_acc[...] += di
        union_acc[...] += du
    else:
        @pl.when(j < n_tiles - 1)
        def _():
            di, du = _tile_partials(yt_ref, yp_ref, tile_rows, threshold, strip_rows)
            inter_acc[...] += di
            union_acc[...] += du

        @pl.when(j == n_tiles - 1)
        def _():
            # Statically-known partial last tile: only valid rows are read; the
            # edge-padded VMEM rows beyond `rows_last` are never touched.
            di, du = _tile_partials(yt_ref, yp_ref, rows_last, threshold, strip_rows)
            inter_acc[...] += di
            union_acc[...] += du

    @pl.when(j == n_tiles - 1)
    def _():
        out_ref[:, :LANES] = inter_acc[...]
        out_ref[:, LANES:] = union_acc[...]


def dice_loss(y_true, y_pred, threshold=0.5, smooth=SMOOTH, *, _tile_rows=None):
    """Pallas TPU implementation of DiceLoss.forward(y_true, y_pred, threshold)."""
    yt = jnp.ravel(y_true)
    yp = jnp.ravel(y_pred)
    n = yt.shape[0]

    inter = jnp.float32(0.0)
    union = jnp.float32(0.0)

    # Largest prefix that is a zero-copy (rows, 128) view with rows % 8 == 0.
    n128 = (n // LANES) * LANES
    rows = n128 // LANES
    rows_k = (rows // SUBLANES) * SUBLANES
    n_kernel = rows_k * LANES

    # --- tiny unaligned remainder (< 1152 elements): plain jnp, no pad copy ---
    if n_kernel < n:
        yt_t = yt[n_kernel:].astype(jnp.float32)
        yp_t = yp[n_kernel:].astype(jnp.float32)
        pred_t = (yp_t > threshold).astype(jnp.float32)
        inter = inter + jnp.sum(pred_t * yt_t)
        union = union + jnp.sum(pred_t) + jnp.sum(yt_t)

    # --- bulk of the data: bandwidth-bound Pallas reduction ---
    if rows_k > 0:
        if n128 == n:
            yt2 = yt.reshape(rows, LANES)
            yp2 = yp.reshape(rows, LANES)
        else:
            # TODO(synk): this prefix slice materializes one copy; only hit when the
            # flattened size is not a multiple of 128.
            yt2 = yt[:n128].reshape(rows, LANES)
            yp2 = yp[:n128].reshape(rows, LANES)

        tile_rows = min(TARGET_TILE_ROWS if _tile_rows is None else _tile_rows, rows_k)
        assert tile_rows % SUBLANES == 0
        n_tiles = pl.cdiv(rows_k, tile_rows)
        rows_last = rows_k - (n_tiles - 1) * tile_rows
        strip_rows = min(STRIP_ROWS, tile_rows)

        kernel = functools.partial(
            _dice_kernel,
            threshold=float(threshold),
            tile_rows=tile_rows,
            rows_last=rows_last,
            n_tiles=n_tiles,
            strip_rows=strip_rows,
        )

        in_bytes = rows_k * LANES * (yt2.dtype.itemsize + yp2.dtype.itemsize)
        step_bytes = tile_rows * LANES * (yt2.dtype.itemsize + yp2.dtype.itemsize)
        vmem_limit = int(2 * step_bytes + (8 << 20))  # double-buffered inputs + headroom

        partials = pl.pallas_call(
            kernel,
            out_shape=jax.ShapeDtypeStruct((SUBLANES, 2 * LANES), jnp.float32),
            grid_spec=pltpu.PrefetchScalarGridSpec(
                num_scalar_prefetch=0,
                grid=(n_tiles,),
                in_specs=[
                    pl.BlockSpec((tile_rows, LANES), lambda j: (j, 0)),
                    pl.BlockSpec((tile_rows, LANES), lambda j: (j, 0)),
                ],
                out_specs=pl.BlockSpec((SUBLANES, 2 * LANES), lambda j: (0, 0)),
                scratch_shapes=[
                    pltpu.VMEM((SUBLANES, LANES), jnp.float32),
                    pltpu.VMEM((SUBLANES, LANES), jnp.float32),
                ],
            ),
            compiler_params=pltpu.CompilerParams(
                dimension_semantics=("arbitrary",),
                vmem_limit_bytes=vmem_limit,
            ),
            cost_estimate=pl.CostEstimate(
                flops=5 * n_kernel,
                transcendentals=0,
                bytes_accessed=in_bytes + SUBLANES * 2 * LANES * 4,
            ),
        )(yt2, yp2)

        inter = inter + jnp.sum(partials[:, :LANES])
        union = union + jnp.sum(partials[:, LANES:])

    smooth = jnp.float32(smooth)
    return 1.0 - (2.0 * inter + smooth) / (union + smooth)


def _dice_ref(y_true, y_pred, threshold=0.5, smooth=SMOOTH):
    yp = (y_pred > threshold).astype(jnp.float32).ravel()
    yt = y_true.astype(jnp.float32).ravel()
    inter = jnp.sum(yp * yt)
    union = jnp.sum(yp) + jnp.sum(yt)
    return 1.0 - (2.0 * inter + smooth) / (union + smooth)


if __name__ == "__main__":
    key = jax.random.PRNGKey(0)
    k1, k2, k3, k4 = jax.random.split(key, 4)

    # 1) Segmentation-style NCHW input whose size is a multiple of 1024 (pure kernel path).
    y_pred = jax.random.uniform(k1, (2, 4, 16, 16), dtype=jnp.float32)
    y_true = (jax.random.uniform(k2, (2, 4, 16, 16)) > 0.5).astype(jnp.float32)
    out = jax.block_until_ready(dice_loss(y_true, y_pred))
    ref = _dice_ref(y_true, y_pred)
    assert jnp.allclose(out, ref, atol=1e-5, rtol=1e-5), (out, ref)

    # 2) Unaligned size: exercises the jnp tail path (no pad, no mask).
    y_pred2 = jax.random.uniform(k3, (3, 5, 7, 11), dtype=jnp.float32)
    y_true2 = (jax.random.uniform(k4, (3, 5, 7, 11)) > 0.5).astype(jnp.float32)
    out2 = jax.block_until_ready(dice_loss(y_true2, y_pred2))
    ref2 = _dice_ref(y_true2, y_pred2)
    assert jnp.allclose(out2, ref2, atol=1e-5, rtol=1e-5), (out2, ref2)

    # 3) Forced multi-tile grid with a partial last tile (exercises the pl.when branch).
    y_pred3 = jax.random.uniform(k3, (4, 4, 32, 32), dtype=jnp.float32)
    y_true3 = (jax.random.uniform(k4, (4, 4, 32, 32)) > 0.5).astype(jnp.float32)
    out3 = jax.block_until_ready(dice_loss(y_true3, y_pred3, _tile_rows=48))
    ref3 = _dice_ref(y_true3, y_pred3)
    assert jnp.allclose(out3, ref3, atol=1e-5, rtol=1e-5), (out3, ref3)

    print("KERNEL_OK")
</pallas_src>

<mosaic_0001>
module attributes {stable_mosaic.version = 11 : i64} {
  func.func @_dice_kernel(%arg0: i32, %arg1: memref<16x128xf32, #tpu.memory_space<vmem>>, %arg2: memref<16x128xf32, #tpu.memory_space<vmem>>, %arg3: memref<8x256xf32, #tpu.memory_space<vmem>>, %arg4: memref<8x128xf32, #tpu.memory_space<vmem>>, %arg5: memref<8x128xf32, #tpu.memory_space<vmem>>) attributes {dimension_semantics = [#tpu.dimension_semantics<arbitrary>], iteration_bounds = array<i64: 1>, scalar_prefetch = 0 : i64, scratch_operands = 2 : i64, tpu.core_type = #tpu.core_type<tc>, window_params = [{transform_indices = @transform_0, window_bounds = array<i64: 16, 128>}, {transform_indices = @transform_1, window_bounds = array<i64: 16, 128>}, {pipeline_mode = #tpu.pipeline_mode<synchronous>, transform_indices = @transform_2, window_bounds = array<i64: 8, 256>}]} {
    %c0_i32 = arith.constant 0 : i32
    %0 = arith.cmpi eq, %arg0, %c0_i32 : i32
    %1 = arith.extui %0 : i1 to i32
    %c0_i32_0 = arith.constant 0 : i32
    %2 = arith.cmpi ne, %1, %c0_i32_0 : i32
    scf.if %2 {
      %cst_21 = arith.constant 0.000000e+00 : f32
      %30 = vector.broadcast %cst_21 : f32 to vector<8x128xf32>
      %c0_22 = arith.constant 0 : index
      %c0_23 = arith.constant 0 : index
      %31 = vector.load %arg4[%c0_22, %c0_23] : memref<8x128xf32, #tpu.memory_space<vmem>>, vector<8x128xf32>
      tpu.vector_store %arg4[%c0_22, %c0_23], %30 {strides = array<i32>} : memref<8x128xf32, #tpu.memory_space<vmem>>, vector<8x128xf32>,
      %cst_24 = arith.constant 0.000000e+00 : f32
      %32 = vector.broadcast %cst_24 : f32 to vector<8x128xf32>
      %c0_25 = arith.constant 0 : index
      %c0_26 = arith.constant 0 : index
      %33 = vector.load %arg5[%c0_25, %c0_26] : memref<8x128xf32, #tpu.memory_space<vmem>>, vector<8x128xf32>
      tpu.vector_store %arg5[%c0_25, %c0_26], %32 {strides = array<i32>} : memref<8x128xf32, #tpu.memory_space<vmem>>, vector<8x128xf32>,
    } else {
    }
    %cst = arith.constant 0.000000e+00 : f32
    %3 = vector.broadcast %cst : f32 to vector<8x128xf32>
    %cst_1 = arith.constant 0.000000e+00 : f32
    %4 = vector.broadcast %cst_1 : f32 to vector<8x128xf32>
    %c0 = arith.constant 0 : index
    %c0_2 = arith.constant 0 : index
    %5 = vector.load %arg1[%c0, %c0_2] : memref<16x128xf32, #tpu.memory_space<vmem>>, vector<16x128xf32>
    %c0_3 = arith.constant 0 : index
    %c0_4 = arith.constant 0 : index
    %6 = vector.load %arg2[%c0_3, %c0_4] : memref<16x128xf32, #tpu.memory_space<vmem>>, vector<16x128xf32>
    %cst_5 = arith.constant 5.000000e-01 : f32
    %7 = vector.broadcast %cst_5 : f32 to vector<16x128xf32>
    %8 = arith.cmpf ogt, %6, %7 : vector<16x128xf32>
    %cst_6 = arith.constant 0.000000e+00 : f32
    %9 = vector.broadcast %cst_6 : f32 to vector<16x128xf32>
    %10 = arith.select %8, %5, %9 : vector<16x128xi1>, vector<16x128xf32>
    %cst_7 = arith.constant 1.000000e+00 : f32
    %cst_8 = arith.constant 0.000000e+00 : f32
    %11 = vector.broadcast %cst_7 : f32 to vector<16x128xf32>
    %12 = vector.broadcast %cst_8 : f32 to vector<16x128xf32>
    %13 = arith.select %8, %11, %12 : vector<16x128xi1>, vector<16x128xf32>
    %14 = arith.addf %13, %5 : vector<16x128xf32>
    %15 = vector.shape_cast %10 : vector<16x128xf32> to vector<2x8x128xf32>
    %cst_9 = arith.constant dense<0.000000e+00> : vector<8x128xf32>
    %16 = vector.multi_reduction <add>, %15, %cst_9 [0] : vector<2x8x128xf32> to vector<8x128xf32>
    %17 = vector.shape_cast %14 : vector<16x128xf32> to vector<2x8x128xf32>
    %cst_10 = arith.constant dense<0.000000e+00> : vector<8x128xf32>
    %18 = vector.multi_reduction <add>, %17, %cst_10 [0] : vector<2x8x128xf32> to vector<8x128xf32>
    %19 = arith.addf %3, %16 : vector<8x128xf32>
    %20 = arith.addf %4, %18 : vector<8x128xf32>
    %c0_11 = arith.constant 0 : index
    %c0_12 = arith.constant 0 : index
    %21 = vector.load %arg4[%c0_11, %c0_12] : memref<8x128xf32, #tpu.memory_space<vmem>>, vector<8x128xf32>
    %22 = arith.addf %21, %19 : vector<8x128xf32>
    %c0_13 = arith.constant 0 : index
    %c0_14 = arith.constant 0 : index
    %23 = vector.load %arg4[%c0_13, %c0_14] : memref<8x128xf32, #tpu.memory_space<vmem>>, vector<8x128xf32>
    tpu.vector_store %arg4[%c0_13, %c0_14], %22 {strides = array<i32>} : memref<8x128xf32, #tpu.memory_space<vmem>>, vector<8x128xf32>,
    %c0_15 = arith.constant 0 : index
    %c0_16 = arith.constant 0 : index
    %24 = vector.load %arg5[%c0_15, %c0_16] : memref<8x128xf32, #tpu.memory_space<vmem>>, vector<8x128xf32>
    %25 = arith.addf %24, %20 : vector<8x128xf32>
    %c0_17 = arith.constant 0 : index
    %c0_18 = arith.constant 0 : index
    %26 = vector.load %arg5[%c0_17, %c0_18] : memref<8x128xf32, #tpu.memory_space<vmem>>, vector<8x128xf32>
    tpu.vector_store %arg5[%c0_17, %c0_18], %25 {strides = array<i32>} : memref<8x128xf32, #tpu.memory_space<vmem>>, vector<8x128xf32>,
    %c0_i32_19 = arith.constant 0 : i32
    %27 = arith.cmpi eq, %arg0, %c0_i32_19 : i32
    %28 = arith.extui %27 : i1 to i32
    %c0_i32_20 = arith.constant 0 : i32
    %29 = arith.cmpi ne, %28, %c0_i32_20 : i32
    scf.if %29 {
      %c0_21 = arith.constant 0 : index
      %c0_22 = arith.constant 0 : index
      %30 = vector.load %arg4[%c0_21, %c0_22] : memref<8x128xf32, #tpu.memory_space<vmem>>, vector<8x128xf32>
      %c0_23 = arith.constant 0 : index
      %c0_24 = arith.constant 0 : index
      %31 = vector.load %arg3[%c0_23, %c0_24] : memref<8x256xf32, #tpu.memory_space<vmem>>, vector<8x128xf32>
      tpu.vector_store %arg3[%c0_23, %c0_24], %30 {strides = array<i32>} : memref<8x256xf32, #tpu.memory_space<vmem>>, vector<8x128xf32>,
      %c0_25 = arith.constant 0 : index
      %c0_26 = arith.constant 0 : index
      %32 = vector.load %arg5[%c0_25, %c0_26] : memref<8x128xf32, #tpu.memory_space<vmem>>, vector<8x128xf32>
      %c0_27 = arith.constant 0 : index
      %c128 = arith.constant 128 : index
      %33 = vector.load %arg3[%c0_27, %c128] : memref<8x256xf32, #tpu.memory_space<vmem>>, vector<8x128xf32>
      tpu.vector_store %arg3[%c0_27, %c128], %32 {strides = array<i32>} : memref<8x256xf32, #tpu.memory_space<vmem>>, vector<8x128xf32>,
    } else {
    }
    return
  }
  func.func @transform_0(%arg0: i32) -> (i32, i32) {
    %c0_i32 = arith.constant 0 : i32
    %c0_i32_0 = arith.constant 0 : i32
    return %arg0, %c0_i32 : i32, i32
  }
  func.func @transform_1(%arg0: i32) -> (i32, i32) {
    %c0_i32 = arith.constant 0 : i32
    %c0_i32_0 = arith.constant 0 : i32
    return %arg0, %c0_i32 : i32, i32
  }
  func.func @transform_2(%arg0: i32) -> (i32, i32) {
    %c0_i32 = arith.constant 0 : i32
    %c0_i32_0 = arith.constant 0 : i32
    %c0_i32_1 = arith.constant 0 : i32
    return %c0_i32, %c0_i32_0 : i32, i32
  }
}

</mosaic_0001>

<llo_original>
// kernel: tpu_custom_call.1
$region0: #{tpu_custom_call.1}
  #allocation0 [shape = 'u32[]', space=smem, size = 0x4, offset = 0x4, fixed_abs, tag = 'smem constant byte address 0x4 - core index']
  #allocation1 [shape = 'u32[144,128]{1,0:T(1,128)}', space=vmem, size = 0x12000, scoped, tag = 'internal scratch']
  #allocation2 [shape = 'f32[8,128]{1,0:T(8,128)}', space=vmem, size = 0x1000, scoped, tag = 'scratch operand']
  #allocation3 [shape = 'f32[8,128]{1,0:T(8,128)}', space=vmem, size = 0x1000, scoped, tag = 'scratch operand']
  %s0 = inlined_call_operand.hbm [shape: f32[16,128], index: 0, kind: input, shape index: {}]
  %s1 = inlined_call_operand.hbm [shape: f32[16,128], index: 1, kind: input, shape index: {}]
  %s2 = inlined_call_operand.hbm [shape: f32[8,256], index: 2, kind: output, shape index: {}]
  %s3 = sld [smem:[#allocation0]]
  $region34: #{tpu_custom_call.1} parent=0
    _
  %s5 = ssub.s32 1, %s3
  %s6 = scalar_select 0, %s5, %s3
  $region1: #{tpu_custom_call.1} parent=0
    #allocation4 [shape = 'u8[8192]{0}', space=vmem, size = 0x2000, scoped, tag = 'input window, operand 0, single buffered']
    #allocation5 [shape = 's32[1]{0}', space=sflag, size = 0x4, scoped, tag = 'scoped memory for tpu_custom_call.1']
    #allocation6 [shape = 's32[1]{0}', space=sflag, size = 0x4, scoped, tag = 'scoped memory for tpu_custom_call.1']
    #allocation7 [shape = 'u8[8192]{0}', space=vmem, size = 0x2000, scoped, tag = 'input window, operand 1, single buffered']
    #allocation8 [shape = 's32[1]{0}', space=sflag, size = 0x4, scoped, tag = 'scoped memory for tpu_custom_call.1']
    #allocation9 [shape = 'u8[8192]{0}', space=vmem, size = 0x2000, scoped, tag = 'output window, operand 0, single buffered']
    %7 = vsyncpa [#allocation5], 0
    %8 = vsyncpa [#allocation8], 0
    %9 = vsyncpa [#allocation6], 0
    // Predicated region
    $region2: #{tpu_custom_call.1} parent=1 // pred_check
      _
    $region3: #{tpu_custom_call.1} parent=1 // pred_check_branch
      %11 = sbr.rel (0) target = $region5
    $region4: #{tpu_custom_call.1} parent=1 // pred_region
      %s13 = ssub.s32 256, 256
      %14 = vsyncadd [#allocation5], %s13
      %s15 = sshll.u32 [#allocation4], 4
      %s16 = int_to_ptr.vmem [resolvable:$true] %s15
      %21 = dma.hbm_to_vmem [thread:$0]  %s0, 256, %s16, [#allocation5], 128, 128, 8
    $region5: #{tpu_custom_call.1} parent=1 // pred_fallthru
      _
    // Predicated region
    $region6: #{tpu_custom_call.1} parent=1 // pred_check
      _
    $region7: #{tpu_custom_call.1} parent=1 // pred_check_branch
      %23 = sbr.rel (0) target = $region9
    $region8: #{tpu_custom_call.1} parent=1 // pred_region
      %s25 = ssub.s32 256, 256
      %26 = vsyncadd [#allocation8], %s25
      %s27 = sshll.u32 [#allocation7], 4
      %s28 = int_to_ptr.vmem [resolvable:$true] %s27
      %33 = dma.hbm_to_vmem [thread:$0]  %s1, 256, %s28, [#allocation8], 128, 128, 8
    $region9: #{tpu_custom_call.1} parent=1 // pred_fallthru
      _
    // Predicated region
    $region10: #{tpu_custom_call.1} parent=1 // pred_check
      _
    $region11: #{tpu_custom_call.1} parent=1 // pred_check_branch
      %35 = sbr.rel (0) target = $region13
    $region12: #{tpu_custom_call.1} parent=1 // pred_region
      %36 = dma.done [#allocation5], 256
    $region13: #{tpu_custom_call.1} parent=1 // pred_fallthru
      _
    // Predicated region
    $region14: #{tpu_custom_call.1} parent=1 // pred_check
      _
    $region15: #{tpu_custom_call.1} parent=1 // pred_check_branch
      %38 = sbr.rel (0) target = $region17
    $region16: #{tpu_custom_call.1} parent=1 // pred_region
      %39 = dma.done [#allocation8], 256
    $region17: #{tpu_custom_call.1} parent=1 // pred_fallthru
      _
    %p40 = scmp.eq.s32.totalorder 0, 0
    // Predicated region
    $region18: #{tpu_custom_call.1} parent=1 // pred_check
      %p41 = pneg %p40
    $region19: #{tpu_custom_call.1} parent=1 // pred_check_branch
      %43 = sbr.rel (%p41) target = $region21
    $region20: #{tpu_custom_call.1} parent=1 // pred_region
      %44 = vst [vmem:[#allocation2] sm:$0xff] 0.0
      %45 = vst [vmem:[#allocation3] sm:$0xff] 0.0
    $region21: #{tpu_custom_call.1} parent=1 // pred_fallthru
      _
    %v46 = vld [vmem:[#allocation4] sm:$0xff]
    %v47 = vld [vmem:[#allocation4 + $0x8] sm:$0xff]
    %v48 = vld [vmem:[#allocation7] sm:$0xff]
    %v49 = vld [vmem:[#allocation7 + $0x8] sm:$0xff]
    %vm50 = vcmp.gt.f32.partialorder %v48, 0.5
    %vm51 = vcmp.gt.f32.partialorder %v49, 0.5
    %v52 = vsel %vm50, %v46, 0.0
    %v53 = vsel %vm51, %v47, 0.0
    %v54 = vsel %vm50, 1.0, 0.0
    %v55 = vsel %vm51, 1.0, 0.0
    %v56 = vadd.f32 %v54, %v46
    %v57 = vadd.f32 %v55, %v47
    %v58 = vadd.f32 %v52, %v53
    %v59 = vadd.f32 %v56, %v57
    %v60 = vadd.f32 %v58, 0.0
    %v61 = vadd.f32 %v59, 0.0
    %v62 = vld [vmem:[#allocation2] sm:$0xff]
    %v63 = vadd.f32 %v62, %v60
    %64 = vst [vmem:[#allocation2] sm:$0xff] %v63
    %v65 = vld [vmem:[#allocation3] sm:$0xff]
    %v66 = vadd.f32 %v65, %v61
    %67 = vst [vmem:[#allocation3] sm:$0xff] %v66
    // Predicated region
    $region22: #{tpu_custom_call.1} parent=1 // pred_check
      %p68 = pneg %p40
    $region23: #{tpu_custom_call.1} parent=1 // pred_check_branch
      %70 = sbr.rel (%p68) target = $region25
    $region24: #{tpu_custom_call.1} parent=1 // pred_region
      %v71 = vld [vmem:[#allocation2] sm:$0xff]
      %72 = vst [vmem:[#allocation9] sm:$0xff] %v71
      %v73 = vld [vmem:[#allocation3] sm:$0xff]
      %74 = vst [vmem:[#allocation9 + $0x8] sm:$0xff] %v73
    $region25: #{tpu_custom_call.1} parent=1 // pred_fallthru
      _
    // Predicated region
    $region26: #{tpu_custom_call.1} parent=1 // pred_check
      _
    $region27: #{tpu_custom_call.1} parent=1 // pred_check_branch
      %76 = sbr.rel (0) target = $region29
    $region28: #{tpu_custom_call.1} parent=1 // pred_region
      %s78 = ssub.s32 256, 256
      %79 = vsyncadd [#allocation6], %s78
      %s81 = sshll.u32 [#allocation9], 4
      %s82 = int_to_ptr.vmem [resolvable:$true] %s81
      %84 = dma.vmem_to_hbm [thread:$0]  %s82, 256, %s2, [#allocation6]
    $region29: #{tpu_custom_call.1} parent=1 // pred_fallthru
      _
    // Predicated region
    $region30: #{tpu_custom_call.1} parent=1 // pred_check
      _
    $region31: #{tpu_custom_call.1} parent=1 // pred_check_branch
      %86 = sbr.rel (0) target = $region33
    $region32: #{tpu_custom_call.1} parent=1 // pred_region
      %87 = dma.done [#allocation6], 256
    $region33: #{tpu_custom_call.1} parent=1 // pred_fallthru
      _
    %88 = vsyncpa [#allocation5], 1
    %89 = vsyncpa [#allocation8], 1
    %90 = vsyncpa [#allocation6], 1

</llo_original>
